<compile_context>
chip_gen: v7x
topology: tpu7x:2x2x1
jax: 0.10.0
libtpu: 0.0.40
codegen_flags: <defaults>
</compile_context>

<pallas_src>
import functools

import jax
import jax.numpy as jnp
import numpy as np
from jax.experimental import pallas as pl
from jax.experimental.pallas import tpu as pltpu

LANE = 128
_TB_MAX = 1024    # max batch-tile rows (sweepable; multiple of 16 for bf16 packing)
_TB_SPLIT = 512   # batches >= this get >=2 grid steps (v7x megacore; harmless on v5e/v6e)


def _round_up(x, m):
    return ((x + m - 1) // m) * m


def _cdiv(a, b):
    return (a + b - 1) // b


def _choose_batch_tiling(B):
    """Pick (TB, B_pad): minimal tail padding, TB <= _TB_MAX, >=2 tiles for big B."""
    n_tiles = max(1, _cdiv(B, _TB_MAX))
    if n_tiles == 1 and B >= _TB_SPLIT:
        n_tiles = 2  # let both TensorCores on v7x get work
    TB = _round_up(_cdiv(B, n_tiles), 16)
    return TB, n_tiles * TB


def actor_kernel(x_ref, w1_ref, b1_ref, w2_ref, b2_ref, w3_ref, b3_ref,
                 probs_ref):
    # State tile arrives f32; cast to bf16 in-kernel (VPU slot has slack,
    # hides under DMA) so the wrapper never writes a bf16 copy to HBM.
    x = x_ref[...].astype(jnp.bfloat16)                       # (TB, S)

    # linear1 + ReLU   (TB, S) @ (S, 128)   [bf16 x bf16 -> f32 acc]
    h1 = jnp.dot(x, w1_ref[...], preferred_element_type=jnp.float32)
    h1 = jnp.maximum(h1 + b1_ref[...], 0.0)                   # f32

    # linear2 + ReLU   (TB, 128) @ (128, 256)
    h2 = jnp.dot(h1.astype(jnp.bfloat16), w2_ref[...],
                 preferred_element_type=jnp.float32)
    h2 = jnp.maximum(h2 + b2_ref[...], 0.0)                   # f32

    # linear3          (TB, 256) @ (256, 128-padded)
    # Padded weight columns are zero and padded bias lanes are -1e30, so
    # padded logits contribute exp(-huge) == 0 to the softmax.
    logits = jnp.dot(h2.astype(jnp.bfloat16), w3_ref[...],
                     preferred_element_type=jnp.float32)
    logits = logits + b3_ref[...]

    # Numerically-stable softmax over the lane-dense last dim.
    m = jnp.max(logits, axis=-1, keepdims=True)
    e = jnp.exp(logits - m)
    denom = jnp.sum(e, axis=-1, keepdims=True)
    probs_ref[...] = e / denom        # exact normalization (sums to 1)


def prepare_actor_params(params):
    """One-time preprocessing (do at init, NOT per forward call):
    bf16 casts of the weight matrices + lane-dense padding of the last layer."""
    w1, b1, w2, b2, w3, b3 = params
    A = w3.shape[1]
    A_pad = _round_up(max(A, LANE), LANE)
    w3p = jnp.zeros((w3.shape[0], A_pad), jnp.float32).at[:, :A].set(w3)
    b3p = jnp.full((1, A_pad), -1e30, jnp.float32).at[:, :A].set(b3)
    return (
        w1.astype(jnp.bfloat16), b1.astype(jnp.float32),
        w2.astype(jnp.bfloat16), b2.astype(jnp.float32),
        w3p.astype(jnp.bfloat16), b3p,
    )


@functools.partial(jax.jit, static_argnames=("action_size", "return_padded"))
def actor_forward(state, prepared, action_size, return_padded=False):
    """state: (B, state_size) f32; prepared: output of prepare_actor_params.
    Returns softmax probs (B, action_size) f32 (or the padded buffer)."""
    w1b, b1, w2b, b2, w3b, b3p = prepared
    B, S = state.shape
    A_pad = w3b.shape[1]

    TB, B_pad = _choose_batch_tiling(B)
    x = state.astype(jnp.float32)
    if B_pad != B:
        x = jnp.pad(x, ((0, B_pad - B), (0, 0)))
    grid = (B_pad // TB,)

    out = pl.pallas_call(
        actor_kernel,
        out_shape=jax.ShapeDtypeStruct((B_pad, A_pad), jnp.float32),
        grid=grid,
        in_specs=[
            pl.BlockSpec((TB, S), lambda i: (i, 0)),       # state: per-tile stream
            pl.BlockSpec(w1b.shape, lambda i: (0, 0)),     # weights/biases:
            pl.BlockSpec(b1.shape, lambda i: (0, 0)),      # constant index maps
            pl.BlockSpec(w2b.shape, lambda i: (0, 0)),     # -> VMEM resident,
            pl.BlockSpec(b2.shape, lambda i: (0, 0)),      #    DMA'd once
            pl.BlockSpec(w3b.shape, lambda i: (0, 0)),
            pl.BlockSpec(b3p.shape, lambda i: (0, 0)),
        ],
        out_specs=pl.BlockSpec((TB, A_pad), lambda i: (i, 0)),
        compiler_params=pltpu.CompilerParams(
            dimension_semantics=("parallel",)),
    )(x, w1b, b1, w2b, b2, w3b, b3p)

    if return_padded:
        return out                      # pad lanes are exactly 0, pad rows garbage
    return out[:B, :action_size]


def init_params(key, state_size, action_size):
    """Deterministic init mimicking PyTorch nn.Linear default U(-1/sqrt(fan_in), +)."""
    dims = [(state_size, 128), (128, 256), (256, action_size)]
    params = []
    for (fan_in, fan_out) in dims:
        key, kw, kb = jax.random.split(key, 3)
        bound = 1.0 / np.sqrt(fan_in)
        # stored as (in, out) so the kernel computes x @ W + b
        w = jax.random.uniform(kw, (fan_in, fan_out), jnp.float32, -bound, bound)
        b = jax.random.uniform(kb, (1, fan_out), jnp.float32, -bound, bound)
        params.extend([w, b])
    return tuple(params)


def actor_reference_f32(state, params):
    w1, b1, w2, b2, w3, b3 = params
    h = jax.nn.relu(state @ w1 + b1)
    h = jax.nn.relu(h @ w2 + b2)
    logits = h @ w3 + b3
    return jax.nn.softmax(logits, axis=-1)


def actor_reference_bf16(state, params):
    """Reference matching the kernel's bf16-operand / f32-accumulate matmuls."""
    w1, b1, w2, b2, w3, b3 = params
    bf = jnp.bfloat16
    h = jnp.dot(state.astype(bf), w1.astype(bf),
                preferred_element_type=jnp.float32) + b1
    h = jax.nn.relu(h)
    h = jnp.dot(h.astype(bf), w2.astype(bf),
                preferred_element_type=jnp.float32) + b2
    h = jax.nn.relu(h)
    logits = jnp.dot(h.astype(bf), w3.astype(bf),
                     preferred_element_type=jnp.float32) + b3
    return jax.nn.softmax(logits, axis=-1)


if __name__ == "__main__":
    key = jax.random.PRNGKey(0)
    state_size = 32
    action_size = 8

    key, k_params = jax.random.split(key)
    params = init_params(k_params, state_size, action_size)
    prepared = prepare_actor_params(params)   # one-time weight cast/pad

    # --- small RL-style batch (single tile) -----------------------------------
    key, k1 = jax.random.split(key)
    state = jax.random.normal(k1, (8, state_size), jnp.float32)
    probs = jax.block_until_ready(actor_forward(state, prepared, action_size))

    ref_bf16 = actor_reference_bf16(state, params)
    ref_f32 = actor_reference_f32(state, params)
    np.testing.assert_allclose(np.asarray(probs), np.asarray(ref_bf16),
                               rtol=5e-3, atol=5e-3)
    np.testing.assert_allclose(np.asarray(probs), np.asarray(ref_f32),
                               rtol=2e-2, atol=2e-2)
    np.testing.assert_allclose(np.asarray(probs).sum(-1),
                               np.ones(8), rtol=1e-4, atol=1e-4)

    # --- larger batch: exercises >=2-tile grid (megacore split) + tail pad ----
    key, k2 = jax.random.split(key)
    batch2 = 600                                # -> TB=304, grid=(2,), pad=8 rows
    state2 = jax.random.normal(k2, (batch2, state_size), jnp.float32)
    probs2 = jax.block_until_ready(actor_forward(state2, prepared, action_size))
    ref2 = actor_reference_bf16(state2, params)
    np.testing.assert_allclose(np.asarray(probs2), np.asarray(ref2),
                               rtol=5e-3, atol=5e-3)
    np.testing.assert_allclose(np.asarray(probs2).sum(-1),
                               np.ones(batch2), rtol=1e-4, atol=1e-4)

    print("KERNEL_OK")
</pallas_src>

<mosaic_0001>
module attributes {stable_mosaic.version = 11 : i64} {
  func.func @actor_kernel(%arg0: i32, %arg1: memref<16x32xf32, #tpu.memory_space<vmem>>, %arg2: memref<32x128xbf16, #tpu.memory_space<vmem>>, %arg3: memref<1x128xf32, #tpu.memory_space<vmem>>, %arg4: memref<128x256xbf16, #tpu.memory_space<vmem>>, %arg5: memref<1x256xf32, #tpu.memory_space<vmem>>, %arg6: memref<256x128xbf16, #tpu.memory_space<vmem>>, %arg7: memref<1x128xf32, #tpu.memory_space<vmem>>, %arg8: memref<16x128xf32, #tpu.memory_space<vmem>>) attributes {dimension_semantics = [#tpu.dimension_semantics<parallel>], iteration_bounds = array<i64: 1>, scalar_prefetch = 0 : i64, scratch_operands = 0 : i64, tpu.core_type = #tpu.core_type<tc>, window_params = [{transform_indices = @transform_0, window_bounds = array<i64: 16, 32>}, {pipeline_mode = #tpu.pipeline_mode<synchronous>, transform_indices = @transform_1, window_bounds = array<i64: 32, 128>}, {pipeline_mode = #tpu.pipeline_mode<synchronous>, transform_indices = @transform_2, window_bounds = array<i64: 1, 128>}, {pipeline_mode = #tpu.pipeline_mode<synchronous>, transform_indices = @transform_3, window_bounds = array<i64: 128, 256>}, {pipeline_mode = #tpu.pipeline_mode<synchronous>, transform_indices = @transform_4, window_bounds = array<i64: 1, 256>}, {pipeline_mode = #tpu.pipeline_mode<synchronous>, transform_indices = @transform_5, window_bounds = array<i64: 256, 128>}, {pipeline_mode = #tpu.pipeline_mode<synchronous>, transform_indices = @transform_6, window_bounds = array<i64: 1, 128>}, {transform_indices = @transform_7, window_bounds = array<i64: 16, 128>}]} {
    %c0 = arith.constant 0 : index
    %c0_0 = arith.constant 0 : index
    %0 = vector.load %arg1[%c0, %c0_0] : memref<16x32xf32, #tpu.memory_space<vmem>>, vector<16x32xf32>
    %1 = arith.truncf %0 : vector<16x32xf32> to vector<16x32xbf16>
    %c0_1 = arith.constant 0 : index
    %c0_2 = arith.constant 0 : index
    %2 = vector.load %arg2[%c0_1, %c0_2] : memref<32x128xbf16, #tpu.memory_space<vmem>>, vector<32x128xbf16>
    %cst = arith.constant dense<0.000000e+00> : vector<16x128xf32>
    %3 = tpu.matmul %1, %2, %cst {dimension_numbers = #tpu.dot_dimension_numbers<[1], [0], [0], [1], [0, 0, 1, 1], [], []>} : vector<16x32xbf16>, vector<32x128xbf16>, vector<16x128xf32> -> vector<16x128xf32>
    %c0_3 = arith.constant 0 : index
    %c0_4 = arith.constant 0 : index
    %4 = vector.load %arg3[%c0_3, %c0_4] : memref<1x128xf32, #tpu.memory_space<vmem>>, vector<1x128xf32>
    %5 = vector.broadcast %4 : vector<1x128xf32> to vector<16x128xf32>
    %6 = arith.addf %3, %5 : vector<16x128xf32>
    %cst_5 = arith.constant 0.000000e+00 : f32
    %7 = vector.broadcast %cst_5 : f32 to vector<16x128xf32>
    %8 = arith.maximumf %6, %7 : vector<16x128xf32>
    %9 = arith.truncf %8 : vector<16x128xf32> to vector<16x128xbf16>
    %c0_6 = arith.constant 0 : index
    %c0_7 = arith.constant 0 : index
    %10 = vector.load %arg4[%c0_6, %c0_7] : memref<128x256xbf16, #tpu.memory_space<vmem>>, vector<128x256xbf16>
    %cst_8 = arith.constant dense<0.000000e+00> : vector<16x256xf32>
    %11 = tpu.matmul %9, %10, %cst_8 {dimension_numbers = #tpu.dot_dimension_numbers<[1], [0], [0], [1], [0, 0, 1, 1], [], []>} : vector<16x128xbf16>, vector<128x256xbf16>, vector<16x256xf32> -> vector<16x256xf32>
    %c0_9 = arith.constant 0 : index
    %c0_10 = arith.constant 0 : index
    %12 = vector.load %arg5[%c0_9, %c0_10] : memref<1x256xf32, #tpu.memory_space<vmem>>, vector<1x256xf32>
    %13 = vector.broadcast %12 : vector<1x256xf32> to vector<16x256xf32>
    %14 = arith.addf %11, %13 : vector<16x256xf32>
    %cst_11 = arith.constant 0.000000e+00 : f32
    %15 = vector.broadcast %cst_11 : f32 to vector<16x256xf32>
    %16 = arith.maximumf %14, %15 : vector<16x256xf32>
    %17 = arith.truncf %16 : vector<16x256xf32> to vector<16x256xbf16>
    %c0_12 = arith.constant 0 : index
    %c0_13 = arith.constant 0 : index
    %18 = vector.load %arg6[%c0_12, %c0_13] : memref<256x128xbf16, #tpu.memory_space<vmem>>, vector<256x128xbf16>
    %cst_14 = arith.constant dense<0.000000e+00> : vector<16x128xf32>
    %19 = tpu.matmul %17, %18, %cst_14 {dimension_numbers = #tpu.dot_dimension_numbers<[1], [0], [0], [1], [0, 0, 1, 1], [], []>} : vector<16x256xbf16>, vector<256x128xbf16>, vector<16x128xf32> -> vector<16x128xf32>
    %c0_15 = arith.constant 0 : index
    %c0_16 = arith.constant 0 : index
    %20 = vector.load %arg7[%c0_15, %c0_16] : memref<1x128xf32, #tpu.memory_space<vmem>>, vector<1x128xf32>
    %21 = vector.broadcast %20 : vector<1x128xf32> to vector<16x128xf32>
    %22 = arith.addf %19, %21 : vector<16x128xf32>
    %cst_17 = arith.constant dense<0xFF800000> : vector<16xf32>
    %23 = vector.multi_reduction <maximumf>, %22, %cst_17 [1] : vector<16x128xf32> to vector<16xf32>
    %24 = vector.shape_cast %23 : vector<16xf32> to vector<16x1xf32>
    %25 = vector.broadcast %24 : vector<16x1xf32> to vector<16x128xf32>
    %26 = arith.subf %22, %25 : vector<16x128xf32>
    %27 = math.exp %26 : vector<16x128xf32>
    %cst_18 = arith.constant dense<0.000000e+00> : vector<16xf32>
    %28 = vector.multi_reduction <add>, %27, %cst_18 [1] : vector<16x128xf32> to vector<16xf32>
    %29 = vector.shape_cast %28 : vector<16xf32> to vector<16x1xf32>
    %30 = vector.broadcast %29 : vector<16x1xf32> to vector<16x128xf32>
    %31 = arith.divf %27, %30 : vector<16x128xf32>
    %c0_19 = arith.constant 0 : index
    %c0_20 = arith.constant 0 : index
    %32 = vector.load %arg8[%c0_19, %c0_20] : memref<16x128xf32, #tpu.memory_space<vmem>>, vector<16x128xf32>
    tpu.vector_store %arg8[%c0_19, %c0_20], %31 {strides = array<i32>} : memref<16x128xf32, #tpu.memory_space<vmem>>, vector<16x128xf32>,
    return
  }
  func.func @transform_0(%arg0: i32) -> (i32, i32) {
    %c0_i32 = arith.constant 0 : i32
    %c0_i32_0 = arith.constant 0 : i32
    return %arg0, %c0_i32 : i32, i32
  }
  func.func @transform_1(%arg0: i32) -> (i32, i32) {
    %c0_i32 = arith.constant 0 : i32
    %c0_i32_0 = arith.constant 0 : i32
    %c0_i32_1 = arith.constant 0 : i32
    return %c0_i32, %c0_i32_0 : i32, i32
  }
  func.func @transform_2(%arg0: i32) -> (i32, i32) {
    %c0_i32 = arith.constant 0 : i32
    %c0_i32_0 = arith.constant 0 : i32
    %c0_i32_1 = arith.constant 0 : i32
    return %c0_i32, %c0_i32_0 : i32, i32
  }
  func.func @transform_3(%arg0: i32) -> (i32, i32) {
    %c0_i32 = arith.constant 0 : i32
    %c0_i32_0 = arith.constant 0 : i32
    %c0_i32_1 = arith.constant 0 : i32
    return %c0_i32, %c0_i32_0 : i32, i32
  }
  func.func @transform_4(%arg0: i32) -> (i32, i32) {
    %c0_i32 = arith.constant 0 : i32
    %c0_i32_0 = arith.constant 0 : i32
    %c0_i32_1 = arith.constant 0 : i32
    return %c0_i32, %c0_i32_0 : i32, i32
  }
  func.func @transform_5(%arg0: i32) -> (i32, i32) {
    %c0_i32 = arith.constant 0 : i32
    %c0_i32_0 = arith.constant 0 : i32
    %c0_i32_1 = arith.constant 0 : i32
    return %c0_i32, %c0_i32_0 : i32, i32
  }
  func.func @transform_6(%arg0: i32) -> (i32, i32) {
    %c0_i32 = arith.constant 0 : i32
    %c0_i32_0 = arith.constant 0 : i32
    %c0_i32_1 = arith.constant 0 : i32
    return %c0_i32, %c0_i32_0 : i32, i32
  }
  func.func @transform_7(%arg0: i32) -> (i32, i32) {
    %c0_i32 = arith.constant 0 : i32
    %c0_i32_0 = arith.constant 0 : i32
    return %arg0, %c0_i32 : i32, i32
  }
}

</mosaic_0001>

<llo_original>
// kernel: actor_forward.1
$region0: #{actor_forward.1}
  #allocation0 [shape = 'u32[]', space=smem, size = 0x4, offset = 0x4, fixed_abs, tag = 'smem constant byte address 0x4 - core index']
  #allocation1 [shape = 'u32[144,128]{1,0:T(1,128)}', space=vmem, size = 0x12000, scoped, tag = 'internal scratch']
  %s0 = inlined_call_operand.vmem [shape: f32[16,32], index: 0, kind: input, shape index: {}]
  %s1 = inlined_call_operand.vmem [shape: bf16[32,128], index: 1, kind: input, shape index: {}]
  %s2 = inlined_call_operand.vmem [shape: f32[1,128], index: 2, kind: input, shape index: {}]
  %s3 = inlined_call_operand.hbm [shape: bf16[128,256], index: 3, kind: input, shape index: {}]
  %s4 = inlined_call_operand.vmem [shape: f32[1,256], index: 4, kind: input, shape index: {}]
  %s5 = inlined_call_operand.hbm [shape: bf16[256,128], index: 5, kind: input, shape index: {}]
  %s6 = inlined_call_operand.vmem [shape: f32[1,128], index: 6, kind: input, shape index: {}]
  %s7 = inlined_call_operand.vmem [shape: f32[16,128], index: 7, kind: output, shape index: {}]
  %s8 = sld [smem:[#allocation0]]
  $region46: #{actor_forward.1} parent=0
    _
  %s10 = ssub.s32 1, %s8
  %s11 = scalar_select 0, %s10, %s8
  $region1: #{actor_forward.1} parent=0
    #allocation2 [shape = 'u8[65536]{0}', space=vmem, size = 0x10000, scoped, tag = 'input window, operand 3, single buffered']
    #allocation3 [shape = 's32[1]{0}', space=sflag, size = 0x4, scoped, tag = 'scoped memory for actor_forward.1']
    #allocation4 [shape = 'u8[65536]{0}', space=vmem, size = 0x10000, scoped, tag = 'input window, operand 5, single buffered']
    #allocation5 [shape = 's32[1]{0}', space=sflag, size = 0x4, scoped, tag = 'scoped memory for actor_forward.1']
    %12 = vsyncpa [#allocation3], 0
    %13 = vsyncpa [#allocation5], 0
    // Predicated region
    $region2: #{actor_forward.1} parent=1 // pred_check
      _
    $region3: #{actor_forward.1} parent=1 // pred_check_branch
      %15 = sbr.rel (0) target = $region5
    $region4: #{actor_forward.1} parent=1 // pred_region
      _
    $region5: #{actor_forward.1} parent=1 // pred_fallthru
      _
    // Predicated region
    $region6: #{actor_forward.1} parent=1 // pred_check
      _
    $region7: #{actor_forward.1} parent=1 // pred_check_branch
      %17 = sbr.rel (0) target = $region9
    $region8: #{actor_forward.1} parent=1 // pred_region
      _
    $region9: #{actor_forward.1} parent=1 // pred_fallthru
      _
    // Predicated region
    $region10: #{actor_forward.1} parent=1 // pred_check
      _
    $region11: #{actor_forward.1} parent=1 // pred_check_branch
      %19 = sbr.rel (0) target = $region13
    $region12: #{actor_forward.1} parent=1 // pred_region
      _
    $region13: #{actor_forward.1} parent=1 // pred_fallthru
      _
    // Predicated region
    $region14: #{actor_forward.1} parent=1 // pred_check
      _
    $region15: #{actor_forward.1} parent=1 // pred_check_branch
      %21 = sbr.rel (0) target = $region17
    $region16: #{actor_forward.1} parent=1 // pred_region
      %s23 = ssub.s32 2048, 2048
      %24 = vsyncadd [#allocation3], %s23
      %s25 = sshll.u32 [#allocation2], 4
      %s26 = int_to_ptr.vmem [resolvable:$true] %s25
      %31 = dma.hbm_to_vmem [thread:$0]  %s3, 2048, %s26, [#allocation3], 128, 128, 8
    $region17: #{actor_forward.1} parent=1 // pred_fallthru
      _
    // Predicated region
    $region18: #{actor_forward.1} parent=1 // pred_check
      _
    $region19: #{actor_forward.1} parent=1 // pred_check_branch
      %33 = sbr.rel (0) target = $region21
    $region20: #{actor_forward.1} parent=1 // pred_region
      _
    $region21: #{actor_forward.1} parent=1 // pred_fallthru
      _
    // Predicated region
    $region22: #{actor_forward.1} parent=1 // pred_check
      _
    $region23: #{actor_forward.1} parent=1 // pred_check_branch
      %35 = sbr.rel (0) target = $region25
    $region24: #{actor_forward.1} parent=1 // pred_region
      %s37 = ssub.s32 2048, 2048
      %38 = vsyncadd [#allocation5], %s37
      %s39 = sshll.u32 [#allocation4], 4
      %s40 = int_to_ptr.vmem [resolvable:$true] %s39
      %45 = dma.hbm_to_vmem [thread:$0]  %s5, 2048, %s40, [#allocation5], 64, 64, 4
    $region25: #{actor_forward.1} parent=1 // pred_fallthru
      _
    // Predicated region
    $region26: #{actor_forward.1} parent=1 // pred_check
      _
    $region27: #{actor_forward.1} parent=1 // pred_check_branch
      %47 = sbr.rel (0) target = $region29
    $region28: #{actor_forward.1} parent=1 // pred_region
      _
    $region29: #{actor_forward.1} parent=1 // pred_fallthru
      _
    // Predicated region
    $region30: #{actor_forward.1} parent=1 // pred_check
      _
    $region31: #{actor_forward.1} parent=1 // pred_check_branch
      %49 = sbr.rel (0) target = $region33
    $region32: #{actor_forward.1} parent=1 // pred_region
      %50 = dma.done [#allocation3], 2048
    $region33: #{actor_forward.1} parent=1 // pred_fallthru
      _
    // Predicated region
    $region34: #{actor_forward.1} parent=1 // pred_check
      _
    $region35: #{actor_forward.1} parent=1 // pred_check_branch
      %52 = sbr.rel (0) target = $region37
    $region36: #{actor_forward.1} parent=1 // pred_region
      %53 = dma.done [#allocation5], 2048
    $region37: #{actor_forward.1} parent=1 // pred_fallthru
      _
    %v55 = vld [vmem:[%s0] sm:$0xff]
    %v56 = vld [vmem:[%s0 + $0x8] sm:$0xff]
    %v57 = vpack.c.bf16 %v56, %v55
    %v58 = vld [vmem:[%s1] sm:$0xf]
    %v59 = vld [vmem:[%s1 + $0x4] sm:$0xf]
    %v60 = vld [vmem:[%s1 + $0x8] sm:$0xf]
    %v61 = vld [vmem:[%s1 + $0xc] sm:$0xf]
    %v62 = vld [vmem:[%s2] sm:$0x1]
    %v64 = vlaneseq
    %v65 = vshrl.u32 %v64, 7
    %v66 = vsub.s32 0, %v65
    %v67 = vrot.slane %v62, %v66
    %v73 = vunpack.c.l.b16 %v58
    %v74 = vunpack.c.l.b16 %v59
    %v75 = vunpack.c.l.b16 %v60
    %v76 = vunpack.c.l.b16 %v61
    %v77 = vpack.c.b16 %v74, %v73
    %v78 = vpack.c.b16 %v76, %v75
    %vm81 = vcmask 261120
    %v83 = vsel %vm81, %v57, 0
    %85 = vmatprep.subr.bf16.mxu0 0
    %86 = vmatpush1.bf16.msra.mxu0 %v77
    %87 = vmatprep.subr.bf16.mxu0 0
    %88 = vmatpush1.bf16.msra.mxu0 %v78
    %89 = vmatprep.subr.bf16.mxu0 0
    %90 = vmatpush1.bf16.msra.mxu0 0
    %91 = vmatprep.subr.bf16.mxu0 0
    %92 = vmatpush1.bf16.msra.mxu0 0
    %93 = vmatprep.subr.bf16.mxu0 0
    %94 = vmatpush1.bf16.msra.mxu0 0
    %95 = vmatprep.subr.bf16.mxu0 0
    %96 = vmatpush1.bf16.msra.mxu0 0
    %97 = vmatprep.subr.bf16.mxu0 0
    %98 = vmatpush1.bf16.msra.mxu0 0
    %99 = vmatprep.subr.bf16.mxu0 0
    %100 = vmatpush1.bf16.msra.mxu0 0
    %101 = vmatprep.subr.bf16.mxu0 0
    %102 = vmatpush1.bf16.msra.mxu0 0
    %103 = vmatprep.subr.bf16.mxu0 0
    %104 = vmatpush1.bf16.msra.mxu0 0
    %105 = vmatprep.subr.bf16.mxu0 0
    %106 = vmatpush1.bf16.msra.mxu0 0
    %107 = vmatprep.subr.bf16.mxu0 0
    %108 = vmatpush1.bf16.msra.mxu0 0
    %109 = vmatprep.subr.bf16.mxu0 0
    %110 = vmatpush1.bf16.msra.mxu0 0
    %111 = vmatprep.subr.bf16.mxu0 0
    %112 = vmatpush1.bf16.msra.mxu0 0
    %113 = vmatprep.subr.bf16.mxu0 0
    %114 = vmatpush1.bf16.msra.mxu0 0
    %115 = vmatprep.subr.bf16.mxu0 0
    %116 = vmatpush1.bf16.msra.mxu0 0
    %117 = vmatprep.mubr.bf16.mxu0 0
    %118 = vmatmul.mubr.bf16.gmra.mrb[0].mxu0 %v83
    %v119 = vpop.f32.mrb[0].mxu0
    %v120 = vadd.f32 %v67, %v119
    %v121 = vpop.f32.mrb[0].mxu0
    %v122 = vpop.f32.mrb[0].mxu0
    %v123 = vadd.f32 %v67, %v122
    %v124 = vpop.f32.mrb[0].mxu0
    %125 = vdwg.mxu0
    %v126 = vmax.f32 %v120, 0.0
    %v127 = vmax.f32 %v123, 0.0
    %v128 = vpack.c.bf16 %v127, %v126
    %v129 = vld [vmem:[#allocation2] sm:$0xff]
    %v130 = vld [vmem:[#allocation2 + $0x8] sm:$0xff]
    %v131 = vld [vmem:[#allocation2 + $0x10] sm:$0xff]
    %v132 = vld [vmem:[#allocation2 + $0x18] sm:$0xff]
    %v133 = vld [vmem:[#allocation2 + $0x20] sm:$0xff]
    %v134 = vld [vmem:[#allocation2 + $0x28] sm:$0xff]
    %v135 = vld [vmem:[#allocation2 + $0x30] sm:$0xff]
    %v136 = vld [vmem:[#allocation2 + $0x38] sm:$0xff]
    %v137 = vld [vmem:[#allocation2 + $0x40] sm:$0xff]
    %v138 = vld [vmem:[#allocation2 + $0x48] sm:$0xff]
    %v139 = vld [vmem:[#allocation2 + $0x50] sm:$0xff]
    %v140 = vld [vmem:[#allocation2 + $0x58] sm:$0xff]
    %v141 = vld [vmem:[#allocation2 + $0x60] sm:$0xff]
    %v142 = vld [vmem:[#allocation2 + $0x68] sm:$0xff]
    %v143 = vld [vmem:[#allocation2 + $0x70] sm:$0xff]
    %v144 = vld [vmem:[#allocation2 + $0x78] sm:$0xff]
    %v145 = vld [vmem:[%s4] sm:$0x3]
    %v147 = vlaneseq
    %v148 = vshrl.u32 %v147, 7
    %v149 = vsub.s32 0, %v148
    %v150 = vrot.slane %v145, %v149
    %v151 = vlaneseq
    %v152 = vshrl.u32 %v151, 7
    %v153 = vsub.s32 1, %v152
    %v154 = vrot.slane %v145, %v153
    %v173 = vunpack.c.l.b16 %v129
    %v174 = vunpack.c.h.b16 %v129
    %v175 = vunpack.c.l.b16 %v130
    %v176 = vunpack.c.h.b16 %v130
    %v177 = vunpack.c.l.b16 %v131
    %v178 = vunpack.c.h.b16 %v131
    %v179 = vunpack.c.l.b16 %v132
    %v180 = vunpack.c.h.b16 %v132
    %v181 = vunpack.c.l.b16 %v133
    %v182 = vunpack.c.h.b16 %v133
    %v183 = vunpack.c.l.b16 %v134
    %v184 = vunpack.c.h.b16 %v134
    %v185 = vunpack.c.l.b16 %v135
    %v186 = vunpack.c.h.b16 %v135
    %v187 = vunpack.c.l.b16 %v136
    %v188 = vunpack.c.h.b16 %v136
    %v189 = vunpack.c.l.b16 %v137
    %v190 = vunpack.c.h.b16 %v137
    %v191 = vunpack.c.l.b16 %v138
    %v192 = vunpack.c.h.b16 %v138
    %v193 = vunpack.c.l.b16 %v139
    %v194 = vunpack.c.h.b16 %v139
    %v195 = vunpack.c.l.b16 %v140
    %v196 = vunpack.c.h.b16 %v140
    %v197 = vunpack.c.l.b16 %v141
    %v198 = vunpack.c.h.b16 %v141
    %v199 = vunpack.c.l.b16 %v142
    %v200 = vunpack.c.h.b16 %v142
    %v201 = vunpack.c.l.b16 %v143
    %v202 = vunpack.c.h.b16 %v143
    %v203 = vunpack.c.l.b16 %v144
    %v204 = vunpack.c.h.b16 %v144
    %v205 = vpack.c.b16 %v175, %v173
    %v206 = vpack.c.b16 %v176, %v174
    %v207 = vpack.c.b16 %v179, %v177
    %v208 = vpack.c.b16 %v180, %v178
    %v209 = vpack.c.b16 %v183, %v181
    %v210 = vpack.c.b16 %v184, %v182
    %v211 = vpack.c.b16 %v187, %v185
    %v212 = vpack.c.b16 %v188, %v186
    %v213 = vpack.c.b16 %v191, %v189
    %v214 = vpack.c.b16 %v192, %v190
    %v215 = vpack.c.b16 %v195, %v193
    %v216 = vpack.c.b16 %v196, %v194
    %v217 = vpack.c.b16 %v199, %v197
    %v218 = vpack.c.b16 %v200, %v198
    %v219 = vpack.c.b16 %v203, %v201
    %v220 = vpack.c.b16 %v204, %v202
    %237 = vmatprep.subr.bf16.mxu0 %v206
    %238 = vmatpush1.bf16.msra.mxu0 %v205
    %239 = vmatprep.subr.bf16.mxu0 %v208
    %240 = vmatpush1.bf16.msra.mxu0 %v207
    %241 = vmatprep.subr.bf16.mxu0 %v210
    %242 = vmatpush1.bf16.msra.mxu0 %v209
    %243 = vmatprep.subr.bf16.mxu0 %v212
    %244 = vmatpush1.bf16.msra.mxu0 %v211
    %245 = vmatprep.subr.bf16.mxu0 %v214
    %246 = vmatpush1.bf16.msra.mxu0 %v213
    %247 = vmatprep.subr.bf16.mxu0 %v216
    %248 = vmatpush1.bf16.msra.mxu0 %v215
    %249 = vmatprep.subr.bf16.mxu0 %v218
    %250 = vmatpush1.bf16.msra.mxu0 %v217
    %251 = vmatprep.subr.bf16.mxu0 %v220
    %252 = vmatpush1.bf16.msra.mxu0 %v219
    %253 = vmatprep.subr.bf16.mxu0 0
    %254 = vmatpush1.bf16.msra.mxu0 0
    %255 = vmatprep.subr.bf16.mxu0 0
    %256 = vmatpush1.bf16.msra.mxu0 0
    %257 = vmatprep.subr.bf16.mxu0 0
    %258 = vmatpush1.bf16.msra.mxu0 0
    %259 = vmatprep.subr.bf16.mxu0 0
    %260 = vmatpush1.bf16.msra.mxu0 0
    %261 = vmatprep.subr.bf16.mxu0 0
    %262 = vmatpush1.bf16.msra.mxu0 0
    %263 = vmatprep.subr.bf16.mxu0 0
    %264 = vmatpush1.bf16.msra.mxu0 0
    %265 = vmatprep.subr.bf16.mxu0 0
    %266 = vmatpush1.bf16.msra.mxu0 0
    %267 = vmatprep.subr.bf16.mxu0 0
    %268 = vmatpush1.bf16.msra.mxu0 0
    %269 = vmatprep.mubr.bf16.mxu0 0
    %270 = vmatmul.mubr.bf16.gmra.mrb[0].mxu0 %v128
    %v271 = vpop.f32.mrb[0].mxu0
    %v272 = vadd.f32 %v150, %v271
    %v273 = vpop.f32.mrb[0].mxu0
    %v274 = vadd.f32 %v154, %v273
    %v275 = vpop.f32.mrb[0].mxu0
    %v276 = vadd.f32 %v150, %v275
    %v277 = vpop.f32.mrb[0].mxu0
    %v278 = vadd.f32 %v154, %v277
    %279 = vdwg.mxu0
    %v280 = vmax.f32 %v272, 0.0
    %v281 = vmax.f32 %v274, 0.0
    %v282 = vmax.f32 %v276, 0.0
    %v283 = vmax.f32 %v278, 0.0
    %v284 = vpack.c.bf16 %v282, %v280
    %v285 = vpack.c.bf16 %v283, %v281
    %v286 = vld [vmem:[#allocation4] sm:$0xf]
    %v287 = vld [vmem:[#allocation4 + $0x4] sm:$0xf]
    %v288 = vld [vmem:[#allocation4 + $0x8] sm:$0xf]
    %v289 = vld [vmem:[#allocation4 + $0xc] sm:$0xf]
    %v290 = vld [vmem:[#allocation4 + $0x10] sm:$0xf]
    %v291 = vld [vmem:[#allocation4 + $0x14] sm:$0xf]
    %v292 = vld [vmem:[#allocation4 + $0x18] sm:$0xf]
    %v293 = vld [vmem:[#allocation4 + $0x1c] sm:$0xf]
    %v294 = vld [vmem:[#allocation4 + $0x20] sm:$0xf]
    %v295 = vld [vmem:[#allocation4 + $0x24] sm:$0xf]
    %v296 = vld [vmem:[#allocation4 + $0x28] sm:$0xf]
    %v297 = vld [vmem:[#allocation4 + $0x2c] sm:$0xf]
    %v298 = vld [vmem:[#allocation4 + $0x30] sm:$0xf]
    %v299 = vld [vmem:[#allocation4 + $0x34] sm:$0xf]
    %v300 = vld [vmem:[#allocation4 + $0x38] sm:$0xf]
    %v301 = vld [vmem:[#allocation4 + $0x3c] sm:$0xf]
    %v302 = vld [vmem:[#allocation4 + $0x40] sm:$0xf]
    %v303 = vld [vmem:[#allocation4 + $0x44] sm:$0xf]
    %v304 = vld [vmem:[#allocation4 + $0x48] sm:$0xf]
    %v305 = vld [vmem:[#allocation4 + $0x4c] sm:$0xf]
    %v306 = vld [vmem:[#allocation4 + $0x50] sm:$0xf]
    %v307 = vld [vmem:[#allocation4 + $0x54] sm:$0xf]
    %v308 = vld [vmem:[#allocation4 + $0x58] sm:$0xf]
    %v309 = vld [vmem:[#allocation4 + $0x5c] sm:$0xf]
    %v310 = vld [vmem:[#allocation4 + $0x60] sm:$0xf]
    %v311 = vld [vmem:[#allocation4 + $0x64] sm:$0xf]
    %v312 = vld [vmem:[#allocation4 + $0x68] sm:$0xf]
    %v313 = vld [vmem:[#allocation4 + $0x6c] sm:$0xf]
    %v314 = vld [vmem:[#allocation4 + $0x70] sm:$0xf]
    %v315 = vld [vmem:[#allocation4 + $0x74] sm:$0xf]
    %v316 = vld [vmem:[#allocation4 + $0x78] sm:$0xf]
    %v317 = vld [vmem:[#allocation4 + $0x7c] sm:$0xf]
    %v318 = vld [vmem:[%s6] sm:$0x1]
    %v320 = vlaneseq
    %v321 = vshrl.u32 %v320, 7
    %v322 = vsub.s32 0, %v321
    %v323 = vrot.slane %v318, %v322
    %v357 = vunpack.c.l.b16 %v286
    %v358 = vunpack.c.l.b16 %v287
    %v359 = vunpack.c.l.b16 %v288
    %v360 = vunpack.c.l.b16 %v289
    %v361 = vunpack.c.l.b16 %v290
    %v362 = vunpack.c.l.b16 %v291
    %v363 = vunpack.c.l.b16 %v292
    %v364 = vunpack.c.l.b16 %v293
    %v365 = vunpack.c.l.b16 %v294
    %v366 = vunpack.c.l.b16 %v295
    %v367 = vunpack.c.l.b16 %v296
    %v368 = vunpack.c.l.b16 %v297
    %v369 = vunpack.c.l.b16 %v298
    %v370 = vunpack.c.l.b16 %v299
    %v371 = vunpack.c.l.b16 %v300
    %v372 = vunpack.c.l.b16 %v301
    %v373 = vunpack.c.l.b16 %v302
    %v374 = vunpack.c.l.b16 %v303
    %v375 = vunpack.c.l.b16 %v304
    %v376 = vunpack.c.l.b16 %v305
    %v377 = vunpack.c.l.b16 %v306
    %v378 = vunpack.c.l.b16 %v307
    %v379 = vunpack.c.l.b16 %v308
    %v380 = vunpack.c.l.b16 %v309
    %v381 = vunpack.c.l.b16 %v310
    %v382 = vunpack.c.l.b16 %v311
    %v383 = vunpack.c.l.b16 %v312
    %v384 = vunpack.c.l.b16 %v313
    %v385 = vunpack.c.l.b16 %v314
    %v386 = vunpack.c.l.b16 %v315
    %v387 = vunpack.c.l.b16 %v316
    %v388 = vunpack.c.l.b16 %v317
    %v389 = vpack.c.b16 %v358, %v357
    %v390 = vpack.c.b16 %v360, %v359
    %v391 = vpack.c.b16 %v362, %v361
    %v392 = vpack.c.b16 %v364, %v363
    %v393 = vpack.c.b16 %v366, %v365
    %v394 = vpack.c.b16 %v368, %v367
    %v395 = vpack.c.b16 %v370, %v369
    %v396 = vpack.c.b16 %v372, %v371
    %v397 = vpack.c.b16 %v374, %v373
    %v398 = vpack.c.b16 %v376, %v375
    %v399 = vpack.c.b16 %v378, %v377
    %v400 = vpack.c.b16 %v380, %v379
    %v401 = vpack.c.b16 %v382, %v381
    %v402 = vpack.c.b16 %v384, %v383
    %v403 = vpack.c.b16 %v386, %v385
    %v404 = vpack.c.b16 %v388, %v387
    %421 = vmatprep.subr.bf16.mxu0 0
    %422 = vmatpush1.bf16.msra.mxu0 %v389
    %423 = vmatprep.subr.bf16.mxu0 0
    %424 = vmatpush1.bf16.msra.mxu0 %v390
    %425 = vmatprep.subr.bf16.mxu0 0
    %426 = vmatpush1.bf16.msra.mxu0 %v391
    %427 = vmatprep.subr.bf16.mxu0 0
    %428 = vmatpush1.bf16.msra.mxu0 %v392
    %429 = vmatprep.subr.bf16.mxu0 0
    %430 = vmatpush1.bf16.msra.mxu0 %v393
    %431 = vmatprep.subr.bf16.mxu0 0
    %432 = vmatpush1.bf16.msra.mxu0 %v394
    %433 = vmatprep.subr.bf16.mxu0 0
    %434 = vmatpush1.bf16.msra.mxu0 %v395
    %435 = vmatprep.subr.bf16.mxu0 0
    %436 = vmatpush1.bf16.msra.mxu0 %v396
    %437 = vmatprep.subr.bf16.mxu0 0
    %438 = vmatpush1.bf16.msra.mxu0 %v397
    %439 = vmatprep.subr.bf16.mxu0 0
    %440 = vmatpush1.bf16.msra.mxu0 %v398
    %441 = vmatprep.subr.bf16.mxu0 0
    %442 = vmatpush1.bf16.msra.mxu0 %v399
    %443 = vmatprep.subr.bf16.mxu0 0
    %444 = vmatpush1.bf16.msra.mxu0 %v400
    %445 = vmatprep.subr.bf16.mxu0 0
    %446 = vmatpush1.bf16.msra.mxu0 %v401
    %447 = vmatprep.subr.bf16.mxu0 0
    %448 = vmatpush1.bf16.msra.mxu0 %v402
    %449 = vmatprep.subr.bf16.mxu0 0
    %450 = vmatpush1.bf16.msra.mxu0 %v403
    %451 = vmatprep.subr.bf16.mxu0 0
    %452 = vmatpush1.bf16.msra.mxu0 %v404
    %453 = vmatprep.mubr.bf16.mxu0 %v285
    %454 = vmatmul.mubr.bf16.gmra.mrb[0].mxu0 %v284
    %v455 = vpop.f32.mrb[0].mxu0
    %v456 = vadd.f32 %v323, %v455
    %v457 = vpop.f32.mrb[0].mxu0
    %v458 = vpop.f32.mrb[0].mxu0
    %v459 = vadd.f32 %v323, %v458
    %v460 = vpop.f32.mrb[0].mxu0
    %461 = vdwg.mxu0
    %462 = vmax.xlane.f32.xlu0 %v456
    %v463 = vpop.xlane.xlu0 %462
    %464 = vmax.xlane.f32.xlu0 %v459
    %v465 = vpop.xlane.xlu0 %464
    %v466 = vsub.f32 %v456, %v463
    %v467 = vsub.f32 %v459, %v465
    %v468 = vmul.f32 %v466, 1.442695
    %v469 = vpow.pop %v468
    %v470 = vmul.f32 %v467, 1.442695
    %v471 = vpow.pop %v470
    %472 = vadd.xlane.f32.xlu0 %v469
    %v473 = vpop.xlane.xlu0 %472
    %474 = vadd.xlane.f32.xlu0 %v471
    %v475 = vpop.xlane.xlu0 %474
    %v476 = vrcp.pop %v473
    %v477 = vmul.f32 %v469, %v476
    %v478 = vrcp.pop %v475
    %v479 = vmul.f32 %v471, %v478
    %480 = vst [vmem:[%s7] sm:$0xff] %v477
    %481 = vst [vmem:[%s7 + $0x8] sm:$0xff] %v479
    // Predicated region
    $region38: #{actor_forward.1} parent=1 // pred_check
      _
    $region39: #{actor_forward.1} parent=1 // pred_check_branch
      %483 = sbr.rel (0) target = $region41
    $region40: #{actor_forward.1} parent=1 // pred_region
      _
    $region41: #{actor_forward.1} parent=1 // pred_fallthru
      _
    // Predicated region
    $region42: #{actor_forward.1} parent=1 // pred_check
      _
    $region43: #{actor_forward.1} parent=1 // pred_check_branch
      %485 = sbr.rel (0) target = $region45
    $region44: #{actor_forward.1} parent=1 // pred_region
      _
    $region45: #{actor_forward.1} parent=1 // pred_fallthru
      _
    %486 = vsyncpa [#allocation3], 1
    %487 = vsyncpa [#allocation5], 1

</llo_original>
